<compile_context>
chip_gen: v5e
topology: v5e:2x2
jax: 0.10.0
libtpu: 0.0.40
codegen_flags: <defaults>
</compile_context>

<pallas_src>
import functools

import jax
import jax.numpy as jnp
from jax.experimental import pallas as pl
from jax.experimental.pallas import tpu as pltpu


def _dropout_kernel(x_ref, bits_ref, o_ref, *, threshold: int, scale: float):
    # keep element iff its random u32 >= threshold  (P(keep) = 1 - p)
    keep = bits_ref[...] >= jnp.uint32(threshold)
    x = x_ref[...]
    scaled = x * jnp.asarray(scale, dtype=x.dtype)
    o_ref[...] = jnp.where(keep, scaled, jnp.zeros_like(scaled))


def _choose_layout(total: int, itemsize: int):
    """Pick (lanes, rows, row_tile, pad_elems) for a lane-dense 2D layout."""
    lanes = 128
    pad = (-total) % 128
    for w in (2048, 1024, 512, 256, 128):
        if total % w == 0:
            lanes, pad = w, 0
            break
    rows = (total + pad) // lanes
    # ~1 MiB of x per block; row tile must be a multiple of 8 or the full extent.
    target_rows = max(8, (1 << 20) // (lanes * itemsize))
    if rows <= target_rows:
        tr = rows
    else:
        tr = (target_rows // 8) * 8
    return lanes, rows, tr, pad


def static_dropout(x: jax.Array, p: float, seed: int) -> jax.Array:
    """F.dropout(x, p, training=True) with a deterministic seed."""
    if p == 0.0:
        return x
    if not (0.0 <= p < 1.0):
        raise ValueError("p must be in [0, 1)")

    orig_shape = x.shape
    total = x.size
    itemsize = jnp.dtype(x.dtype).itemsize
    lanes, rows, tr, pad = _choose_layout(total, itemsize)

    x_flat = jnp.reshape(x, (-1,))
    if pad:
        # Ragged fallback only (total not a multiple of 128).
        x_flat = jnp.pad(x_flat, (0, pad))
    x2d = jnp.reshape(x_flat, (rows, lanes))

    # Deterministic random bits for the whole (padded) slab.
    bits = jax.random.bits(jax.random.PRNGKey(seed), (rows, lanes), dtype=jnp.uint32)

    threshold = min(int(round(p * (1 << 32))), (1 << 32) - 1)
    scale = 1.0 / (1.0 - p)

    kernel = functools.partial(_dropout_kernel, threshold=threshold, scale=scale)
    grid = (pl.cdiv(rows, tr),)
    out2d = pl.pallas_call(
        kernel,
        out_shape=jax.ShapeDtypeStruct((rows, lanes), x.dtype),
        grid=grid,
        in_specs=[
            pl.BlockSpec((tr, lanes), lambda i: (i, 0)),  # x
            pl.BlockSpec((tr, lanes), lambda i: (i, 0)),  # random bits
        ],
        out_specs=pl.BlockSpec((tr, lanes), lambda i: (i, 0)),
        compiler_params=pltpu.CompilerParams(
            dimension_semantics=("parallel",),
        ),
    )(x2d, bits)

    if pad:
        out_flat = jnp.reshape(out2d, (-1,))[:total]
        return jnp.reshape(out_flat, orig_shape)
    return jnp.reshape(out2d, orig_shape)


if __name__ == "__main__":
    key = jax.random.PRNGKey(0)
    # layout: NCHW, matching the PyTorch module's expected conv-style input.
    x = jax.random.normal(key, (2, 4, 16, 16), dtype=jnp.float32)

    p = 0.5
    out = static_dropout(x, p=p, seed=0)
    out = jax.block_until_ready(out)

    # Sanity checks on dropout semantics: every output is either 0 or x/(1-p).
    scaled = x / (1.0 - p)
    is_zero = out == 0.0
    is_scaled = jnp.isclose(out, scaled, rtol=1e-6, atol=1e-6)
    assert bool(jnp.all(is_zero | is_scaled)), "dropout output mismatch"
    # Kept fraction should be roughly (1 - p).
    kept_frac = float(jnp.mean((~is_zero).astype(jnp.float32)))
    assert 0.3 < kept_frac < 0.7, f"kept fraction {kept_frac} implausible for p={p}"

    print("KERNEL_OK")
</pallas_src>

<mosaic_0001>
module attributes {stable_mosaic.version = 11 : i64} {
  func.func @_dropout_kernel(%arg0: i32, %arg1: memref<1x2048xf32, #tpu.memory_space<vmem>>, %arg2: memref<1x2048xi32, #tpu.memory_space<vmem>>, %arg3: memref<1x2048xf32, #tpu.memory_space<vmem>>) attributes {dimension_semantics = [#tpu.dimension_semantics<parallel>], iteration_bounds = array<i64: 1>, scalar_prefetch = 0 : i64, scratch_operands = 0 : i64, tpu.core_type = #tpu.core_type<tc>, window_params = [{transform_indices = @transform_0, window_bounds = array<i64: 1, 2048>}, {transform_indices = @transform_1, window_bounds = array<i64: 1, 2048>}, {transform_indices = @transform_2, window_bounds = array<i64: 1, 2048>}]} {
    %c0 = arith.constant 0 : index
    %c0_0 = arith.constant 0 : index
    %0 = vector.load %arg2[%c0, %c0_0] : memref<1x2048xi32, #tpu.memory_space<vmem>>, vector<1x2048xi32>
    %c-2147483648_i32 = arith.constant -2147483648 : i32
    %1 = vector.broadcast %c-2147483648_i32 : i32 to vector<1x2048xi32>
    %2 = arith.cmpi uge, %0, %1 : vector<1x2048xi32>
    %c0_1 = arith.constant 0 : index
    %c0_2 = arith.constant 0 : index
    %3 = vector.load %arg1[%c0_1, %c0_2] : memref<1x2048xf32, #tpu.memory_space<vmem>>, vector<1x2048xf32>
    %cst = arith.constant 2.000000e+00 : f32
    %4 = vector.broadcast %cst : f32 to vector<1x2048xf32>
    %5 = arith.mulf %3, %4 : vector<1x2048xf32>
    %cst_3 = arith.constant 0.000000e+00 : f32
    %6 = vector.broadcast %cst_3 : f32 to vector<1x2048xf32>
    %7 = arith.select %2, %5, %6 : vector<1x2048xi1>, vector<1x2048xf32>
    %c0_4 = arith.constant 0 : index
    %c0_5 = arith.constant 0 : index
    %8 = vector.load %arg3[%c0_4, %c0_5] : memref<1x2048xf32, #tpu.memory_space<vmem>>, vector<1x2048xf32>
    tpu.vector_store %arg3[%c0_4, %c0_5], %7 {strides = array<i32>} : memref<1x2048xf32, #tpu.memory_space<vmem>>, vector<1x2048xf32>,
    return
  }
  func.func @transform_0(%arg0: i32) -> (i32, i32) {
    %c0_i32 = arith.constant 0 : i32
    %c0_i32_0 = arith.constant 0 : i32
    return %arg0, %c0_i32 : i32, i32
  }
  func.func @transform_1(%arg0: i32) -> (i32, i32) {
    %c0_i32 = arith.constant 0 : i32
    %c0_i32_0 = arith.constant 0 : i32
    return %arg0, %c0_i32 : i32, i32
  }
  func.func @transform_2(%arg0: i32) -> (i32, i32) {
    %c0_i32 = arith.constant 0 : i32
    %c0_i32_0 = arith.constant 0 : i32
    return %arg0, %c0_i32 : i32, i32
  }
}

</mosaic_0001>

<llo_original>
// kernel: tpu_custom_call.1
$region0: #{tpu_custom_call.1}
  #allocation0 [shape = 'u32[]', space=smem, size = 0x4, offset = 0x4, fixed_abs, tag = 'smem constant byte address 0x4 - core index']
  #allocation1 [shape = 'u32[72,128]{1,0:T(1,128)}', space=vmem, size = 0x9000, scoped, tag = 'internal scratch']
  %s0 = inlined_call_operand.hbm [shape: f32[1,2048], index: 0, kind: input, shape index: {}]
  %s1 = inlined_call_operand.hbm [shape: u32[1,2048], index: 1, kind: input, shape index: {}]
  %s2 = inlined_call_operand.hbm [shape: f32[1,2048], index: 2, kind: output, shape index: {}]
  %s3 = sld [smem:[#allocation0]]
  $region26: #{tpu_custom_call.1} parent=0
    _
  %s5 = ssub.s32 1, %s3
  %s6 = scalar_select 0, %s5, %s3
  $region1: #{tpu_custom_call.1} parent=0
    #allocation2 [shape = 'u8[8192]{0}', space=vmem, size = 0x2000, scoped, tag = 'input window, operand 0, single buffered']
    #allocation3 [shape = 's32[1]{0}', space=sflag, size = 0x4, scoped, tag = 'scoped memory for tpu_custom_call.1']
    #allocation4 [shape = 's32[1]{0}', space=sflag, size = 0x4, scoped, tag = 'scoped memory for tpu_custom_call.1']
    #allocation5 [shape = 'u8[8192]{0}', space=vmem, size = 0x2000, scoped, tag = 'input window, operand 1, single buffered']
    #allocation6 [shape = 's32[1]{0}', space=sflag, size = 0x4, scoped, tag = 'scoped memory for tpu_custom_call.1']
    #allocation7 [shape = 'u8[8192]{0}', space=vmem, size = 0x2000, scoped, tag = 'output window, operand 0, single buffered']
    %7 = vsyncpa [#allocation3], 0
    %8 = vsyncpa [#allocation6], 0
    %9 = vsyncpa [#allocation4], 0
    // Predicated region
    $region2: #{tpu_custom_call.1} parent=1 // pred_check
      _
    $region3: #{tpu_custom_call.1} parent=1 // pred_check_branch
      %11 = sbr.rel (0) target = $region5
    $region4: #{tpu_custom_call.1} parent=1 // pred_region
      %13 = vsyncadd [#allocation3], 0
      %s15 = sshll.u32 %s0, 4
      %s16 = int_to_ptr.hbm [resolvable:$true] %s15
      %s17 = sshll.u32 [#allocation2], 4
      %s18 = int_to_ptr.vmem [resolvable:$true] %s17
      %20 = dma.hbm_to_vmem [thread:$0]  %s16, 256, %s18, [#allocation3]
    $region5: #{tpu_custom_call.1} parent=1 // pred_fallthru
      _
    // Predicated region
    $region6: #{tpu_custom_call.1} parent=1 // pred_check
      _
    $region7: #{tpu_custom_call.1} parent=1 // pred_check_branch
      %22 = sbr.rel (0) target = $region9
    $region8: #{tpu_custom_call.1} parent=1 // pred_region
      %24 = vsyncadd [#allocation6], 0
      %s26 = sshll.u32 %s1, 4
      %s27 = int_to_ptr.hbm [resolvable:$true] %s26
      %s28 = sshll.u32 [#allocation5], 4
      %s29 = int_to_ptr.vmem [resolvable:$true] %s28
      %31 = dma.hbm_to_vmem [thread:$0]  %s27, 256, %s29, [#allocation6]
    $region9: #{tpu_custom_call.1} parent=1 // pred_fallthru
      _
    // Predicated region
    $region10: #{tpu_custom_call.1} parent=1 // pred_check
      _
    $region11: #{tpu_custom_call.1} parent=1 // pred_check_branch
      %33 = sbr.rel (0) target = $region13
    $region12: #{tpu_custom_call.1} parent=1 // pred_region
      %35 = dma.done [#allocation3], 256
    $region13: #{tpu_custom_call.1} parent=1 // pred_fallthru
      _
    // Predicated region
    $region14: #{tpu_custom_call.1} parent=1 // pred_check
      _
    $region15: #{tpu_custom_call.1} parent=1 // pred_check_branch
      %37 = sbr.rel (0) target = $region17
    $region16: #{tpu_custom_call.1} parent=1 // pred_region
      %39 = dma.done [#allocation6], 256
    $region17: #{tpu_custom_call.1} parent=1 // pred_fallthru
      _
    %v40 = vld [vmem:[#allocation5] sm:$0xff]
    %v41 = vld [vmem:[#allocation5 + $0x8] sm:$0xff]
    %v42 = vadd.s32 %v40, 2147483648
    %vm44 = vcmp.ge.s32.totalorder %v42, 0
    %v45 = vadd.s32 %v41, 2147483648
    %vm47 = vcmp.ge.s32.totalorder %v45, 0
    %v48 = vld [vmem:[#allocation2] sm:$0xff]
    %v49 = vld [vmem:[#allocation2 + $0x8] sm:$0xff]
    %v50 = vmul.f32 %v48, 2.0
    %v51 = vmul.f32 %v49, 2.0
    %v52 = vsel %vm44, %v50, 0.0
    %v53 = vsel %vm47, %v51, 0.0
    %54 = vst [vmem:[#allocation7] sm:$0xff] %v52
    %55 = vst [vmem:[#allocation7 + $0x8] sm:$0xff] %v53
    // Predicated region
    $region18: #{tpu_custom_call.1} parent=1 // pred_check
      _
    $region19: #{tpu_custom_call.1} parent=1 // pred_check_branch
      %57 = sbr.rel (0) target = $region21
    $region20: #{tpu_custom_call.1} parent=1 // pred_region
      %59 = vsyncadd [#allocation4], 0
      %s61 = sshll.u32 [#allocation7], 4
      %s62 = int_to_ptr.vmem [resolvable:$true] %s61
      %s63 = sshll.u32 %s2, 4
      %s64 = int_to_ptr.hbm [resolvable:$true] %s63
      %66 = dma.vmem_to_hbm [thread:$0]  %s62, 256, %s64, [#allocation4]
    $region21: #{tpu_custom_call.1} parent=1 // pred_fallthru
      _
    // Predicated region
    $region22: #{tpu_custom_call.1} parent=1 // pred_check
      _
    $region23: #{tpu_custom_call.1} parent=1 // pred_check_branch
      %68 = sbr.rel (0) target = $region25
    $region24: #{tpu_custom_call.1} parent=1 // pred_region
      %70 = dma.done [#allocation4], 256
    $region25: #{tpu_custom_call.1} parent=1 // pred_fallthru
      _
    %71 = vsyncpa [#allocation3], 1
    %72 = vsyncpa [#allocation6], 1
    %73 = vsyncpa [#allocation4], 1

</llo_original>
